<compile_context>
chip_gen: v5e
topology: v5e:2x2
jax: 0.10.0
libtpu: 0.0.40
codegen_flags: <defaults>
</compile_context>

<pallas_src>
import functools

import numpy as np
import jax
import jax.numpy as jnp
from jax.experimental import pallas as pl
from jax.experimental.pallas import tpu as pltpu

SEQUENCE_SIZE = 3
D_IN = SEQUENCE_SIZE * 25      # 75 (as in the source script)
H = 32                         # hidden size of linear1 / linear2 output
H2 = 16                        # LSTM hidden size
D_OUT = 3
NUM_LAYERS = 5                 # torch.nn.LSTM(H, H2, 5)

LANE = 128                     # every slab / state row is one full lane group
GATES = 4 * H2                 # 64 gate columns, ordered (i, f, o, g)
H0_OFF_L0 = 80                 # lane offset of h0[0] inside the layer-0 lhs
H0_OFF = H2                    # lane offset of h0[l] (l>=1) inside the lhs
BIAS_LANE = LANE - 1           # lane that carries a constant 1.0 (folds biases)

# Runtime "state" array row layout (shape (16, 128), built in the wrapper):
ROW_H0 = 0                     # rows 0..4 : h0 contribution per layer (+1 at BIAS_LANE)
ROW_OUT_BIAS = NUM_LAYERS      # row 5     : only the 1.0 at BIAS_LANE (output-head lhs)
ROW_X = 6                      # row 6     : flattened x, zero-padded to 128 lanes
ROW_C0 = 8                     # rows 8..12: c0[l] at lanes 0:H2
STATE_ROWS = 16


def _two_layer_net_kernel(slab_ref, state_ref, out_ref, hc_ref, *,
                          hidden_size, num_layers):
    f32 = jnp.float32
    h2 = hidden_size
    h3 = 3 * h2

    hs, cs = [], []
    # Layer-0 input: flattened x already padded to 128 lanes (linear1 is fused
    # into the layer-0 weight block).
    inp = state_ref[pl.ds(ROW_X, 1), :]                          # (1, 128)

    for l in range(num_layers):
        # lhs = [input | h0[l] | ... | 1.0] assembled with one VPU add:
        # the h0 row already carries h0[l] at the W_hh lane offset and the
        # constant 1.0 at BIAS_LANE (bias rows of the weight block).
        lhs = inp + state_ref[pl.ds(ROW_H0 + l, 1), :]           # (1, 128)

        w = slab_ref[pl.ds(l * LANE, LANE), :]                   # (128, 128), static slice
        gates = jnp.dot(lhs, w, preferred_element_type=f32)      # (1, 128); cols 0:64 live

        # Gate columns are pre-permuted to (i, f, o, g): one sigmoid over a
        # contiguous 48-lane slice, one 16-lane tanh, ~3 lane extractions.
        sig = jax.nn.sigmoid(gates[:, :h3])                      # (1, 48)
        g_g = jnp.tanh(gates[:, h3:4 * h2])                      # (1, 16)
        i_g = sig[:, :h2]
        f_g = sig[:, h2:2 * h2]
        o_g = sig[:, 2 * h2:h3]

        c_prev = state_ref[pl.ds(ROW_C0 + l, 1), :][:, :h2]      # (1, 16), offset-0 slice
        c_new = f_g * c_prev + i_g * g_g
        h_new = o_g * jnp.tanh(c_new)

        hs.append(h_new)
        cs.append(c_new)
        # Next layer's input: h_new at lanes 0:H2, zeros elsewhere.
        inp = jnp.concatenate([h_new, jnp.zeros((1, LANE - h2), f32)], axis=1)

    # linear2 + final Linear fused into one (128,128) block; its bias sits on
    # the BIAS_LANE row, fed by the constant-1 row of the state array.
    lhs_o = inp + state_ref[pl.ds(ROW_OUT_BIAS, 1), :]
    w_out = slab_ref[pl.ds(num_layers * LANE, LANE), :]
    out_ref[...] = jnp.dot(lhs_o, w_out, preferred_element_type=f32)  # (1,128), lane-dense

    # Single packed store for all per-layer states (h_n rows then c_n rows).
    hc_ref[...] = jnp.concatenate(hs + cs, axis=0)                # (2*L, H2)


def prepare_params(params):
    """One-time preprocessing: build the fused, lane-dense weight slab.

    Slab layout, shape ((NUM_LAYERS+1)*128, 128), float32:
      block l (rows l*128 .. l*128+127), l = 0..4  -> LSTM layer l:
        layer 0: rows 0:75   = W1^T @ W_ih0^T (linear1 fused), cols 0:64
                 rows 80:96  = W_hh0^T
                 row  127    = b1 @ W_ih0^T + b_ih0 + b_hh0
        layer>0: rows 0:16   = W_ih_l^T
                 rows 16:32  = W_hh_l^T
                 row  127    = b_ih_l + b_hh_l
      block 5 -> output head: rows 0:16 = W2^T @ W3^T (cols 0:3),
                 row 127 = b2 @ W3^T + b3.
    All gate columns are permuted from PyTorch (i,f,g,o) to (i,f,o,g).
    """
    f32 = jnp.float32
    perm = np.concatenate([np.arange(0, H2), np.arange(H2, 2 * H2),
                           np.arange(3 * H2, 4 * H2), np.arange(2 * H2, 3 * H2)])

    blocks = []

    # ---- layer 0 (linear1 fused in) ----
    w1_t = params["w1"].T.astype(f32)                           # (D_in, H)
    b1 = params["b1"].reshape(1, H).astype(f32)
    wih0 = params["w_ih"][0].T[:, perm].astype(f32)             # (H, 64)
    whh0 = params["w_hh"][0].T[:, perm].astype(f32)             # (H2, 64)
    bsum0 = (params["b_ih"][0] + params["b_hh"][0])[perm].astype(f32)
    blk = jnp.zeros((LANE, LANE), f32)
    blk = blk.at[0:D_IN, 0:GATES].set(w1_t @ wih0)
    blk = blk.at[H0_OFF_L0:H0_OFF_L0 + H2, 0:GATES].set(whh0)
    blk = blk.at[BIAS_LANE, 0:GATES].set((b1 @ wih0).reshape(-1) + bsum0)
    blocks.append(blk)

    # ---- layers 1..4 ----
    for l in range(1, NUM_LAYERS):
        wih = params["w_ih"][l].T[:, perm].astype(f32)          # (H2, 64)
        whh = params["w_hh"][l].T[:, perm].astype(f32)          # (H2, 64)
        bsum = (params["b_ih"][l] + params["b_hh"][l])[perm].astype(f32)
        blk = jnp.zeros((LANE, LANE), f32)
        blk = blk.at[0:H2, 0:GATES].set(wih)
        blk = blk.at[H0_OFF:H0_OFF + H2, 0:GATES].set(whh)
        blk = blk.at[BIAS_LANE, 0:GATES].set(bsum)
        blocks.append(blk)

    # ---- output head: linear2 fused into the final Linear ----
    w2_t = params["w2"].T.astype(f32)                           # (H2, H)
    w3_t = params["w3"].T.astype(f32)                           # (H, D_out)
    w_out = w2_t @ w3_t                                         # (H2, D_out)
    b_out = (params["b2"].reshape(1, H).astype(f32) @ w3_t
             + params["b3"].reshape(1, D_OUT).astype(f32))      # (1, D_out)
    blk = jnp.zeros((LANE, LANE), f32)
    blk = blk.at[0:H2, 0:D_OUT].set(w_out)
    blk = blk.at[BIAS_LANE, 0:D_OUT].set(b_out.reshape(-1))
    blocks.append(blk)

    return jnp.concatenate(blocks, axis=0)                      # ((L+1)*128, 128)


def _build_state(x, h0, c0):
    """Pack all runtime data (x, h0, c0, bias-1 lanes) into one (16,128) array."""
    f32 = jnp.float32
    x_flat = x.reshape(1, -1).astype(f32)                       # x.view(1, -1)
    h0f = h0.reshape(NUM_LAYERS, H2).astype(f32)
    c0f = c0.reshape(NUM_LAYERS, H2).astype(f32)

    state = jnp.zeros((STATE_ROWS, LANE), f32)
    state = state.at[ROW_H0, H0_OFF_L0:H0_OFF_L0 + H2].set(h0f[0])
    state = state.at[ROW_H0 + 1:ROW_H0 + NUM_LAYERS, H0_OFF:H0_OFF + H2].set(h0f[1:])
    state = state.at[:ROW_OUT_BIAS + 1, BIAS_LANE].set(1.0)     # bias-1 lane, rows 0..5
    state = state.at[ROW_X, :D_IN].set(x_flat[0])
    state = state.at[ROW_C0:ROW_C0 + NUM_LAYERS, :H2].set(c0f)
    return state


@jax.jit
def two_layer_net_forward(x, slab, h0, c0):
    """Pallas implementation of TwoLayerNet.forward(x, hidden=(h0, c0)).

    `slab` must come from prepare_params() (computed once, not per call)."""
    state = _build_state(x, h0, c0)

    kernel = functools.partial(_two_layer_net_kernel,
                               hidden_size=H2, num_layers=NUM_LAYERS)
    vmem = pl.BlockSpec(memory_space=pltpu.MemorySpace.VMEM)

    out_pad, hc = pl.pallas_call(
        kernel,
        out_shape=(
            jax.ShapeDtypeStruct((1, LANE), jnp.float32),            # head output, lane-dense
            jax.ShapeDtypeStruct((2 * NUM_LAYERS, H2), jnp.float32),  # h_n rows, then c_n rows
        ),
        in_specs=[vmem, vmem],
        out_specs=(vmem, vmem),
    )(slab, state)

    out = out_pad[:, :D_OUT]
    h_n = hc[:NUM_LAYERS].reshape(NUM_LAYERS, 1, H2)
    c_n = hc[NUM_LAYERS:].reshape(NUM_LAYERS, 1, H2)
    return out, (h_n, c_n)


def init_params(key):
    """Deterministic parameter init with PyTorch-style shapes."""
    keys = list(jax.random.split(key, 6 + 4 * NUM_LAYERS))
    ki = iter(keys)

    def u(shape, scale):
        return jax.random.uniform(next(ki), shape, jnp.float32, -scale, scale)

    p = {}
    p["w1"] = u((H, D_IN), 1.0 / D_IN ** 0.5)
    p["b1"] = u((H,), 1.0 / D_IN ** 0.5)
    s = 1.0 / H2 ** 0.5
    p["w_ih"] = [u((4 * H2, H if l == 0 else H2), s) for l in range(NUM_LAYERS)]
    p["w_hh"] = [u((4 * H2, H2), s) for l in range(NUM_LAYERS)]
    p["b_ih"] = [u((4 * H2,), s) for l in range(NUM_LAYERS)]
    p["b_hh"] = [u((4 * H2,), s) for l in range(NUM_LAYERS)]
    p["w2"] = u((H, H2), 1.0 / H2 ** 0.5)
    p["b2"] = u((H,), 1.0 / H2 ** 0.5)
    p["w3"] = u((D_OUT, H), 1.0 / H ** 0.5)
    p["b3"] = u((D_OUT,), 1.0 / H ** 0.5)
    return p


def reference_forward(x, params, h0, c0):
    """Pure-JAX reference mirroring PyTorch semantics (unfused, PyTorch gate order)."""
    inp = x.reshape(1, -1) @ params["w1"].T + params["b1"]
    hs, cs = [], []
    for l in range(NUM_LAYERS):
        gates = (inp @ params["w_ih"][l].T + h0[l] @ params["w_hh"][l].T
                 + params["b_ih"][l] + params["b_hh"][l])
        i = jax.nn.sigmoid(gates[:, :H2])
        f = jax.nn.sigmoid(gates[:, H2:2 * H2])
        g = jnp.tanh(gates[:, 2 * H2:3 * H2])
        o = jax.nn.sigmoid(gates[:, 3 * H2:])
        c = f * c0[l] + i * g
        h = o * jnp.tanh(c)
        hs.append(h)
        cs.append(c)
        inp = h
    out = inp @ params["w2"].T + params["b2"]
    out2 = out @ params["w3"].T + params["b3"]
    return out2, (jnp.stack(hs), jnp.stack(cs))


if __name__ == "__main__":
    key = jax.random.PRNGKey(0)
    pkey, xkey = jax.random.split(key)
    params = init_params(pkey)
    slab = prepare_params(params)            # one-time, hoisted out of the call path
    jax.block_until_ready(slab)

    # x of shape (sequence_size, 25); forward flattens it to (1, 75).
    x = jax.random.normal(xkey, (SEQUENCE_SIZE, 25), jnp.float32)
    h0 = jnp.zeros((NUM_LAYERS, 1, H2), jnp.float32)  # hidden=None -> zero state
    c0 = jnp.zeros((NUM_LAYERS, 1, H2), jnp.float32)

    out, (h_n, c_n) = two_layer_net_forward(x, slab, h0, c0)
    jax.block_until_ready((out, h_n, c_n))

    # Also check with a nonzero hidden state to exercise the h0 @ W_hh path.
    h1 = jax.random.normal(jax.random.PRNGKey(1), (NUM_LAYERS, 1, H2), jnp.float32)
    c1 = jax.random.normal(jax.random.PRNGKey(2), (NUM_LAYERS, 1, H2), jnp.float32)
    out_b, (h_nb, c_nb) = two_layer_net_forward(x, slab, h1, c1)
    jax.block_until_ready((out_b, h_nb, c_nb))

    ref_out, (ref_h, ref_c) = reference_forward(x, params, h0, c0)
    ref_out_b, (ref_hb, ref_cb) = reference_forward(x, params, h1, c1)

    assert out.shape == (1, D_OUT) and h_n.shape == (NUM_LAYERS, 1, H2)
    assert jnp.allclose(out, ref_out, atol=2e-3, rtol=2e-3)
    assert jnp.allclose(h_n, ref_h, atol=2e-3, rtol=2e-3)
    assert jnp.allclose(c_n, ref_c, atol=2e-3, rtol=2e-3)
    assert jnp.allclose(out_b, ref_out_b, atol=2e-3, rtol=2e-3)
    assert jnp.allclose(h_nb, ref_hb, atol=2e-3, rtol=2e-3)
    assert jnp.allclose(c_nb, ref_cb, atol=2e-3, rtol=2e-3)

    print("KERNEL_OK")
</pallas_src>

<mosaic_0001>
module attributes {stable_mosaic.version = 11 : i64} {
  func.func @_two_layer_net_kernel(%arg0: memref<768x128xf32, #tpu.memory_space<vmem>>, %arg1: memref<16x128xf32, #tpu.memory_space<vmem>>, %arg2: memref<1x128xf32, #tpu.memory_space<vmem>>, %arg3: memref<10x16xf32, #tpu.memory_space<vmem>>) attributes {dimension_semantics = [], scalar_prefetch = 0 : i64, scratch_operands = 0 : i64, tpu.core_type = #tpu.core_type<tc>} {
    %c6 = arith.constant 6 : index
    %c0 = arith.constant 0 : index
    %0 = vector.load %arg1[%c6, %c0] : memref<16x128xf32, #tpu.memory_space<vmem>>, vector<1x128xf32>
    %c0_0 = arith.constant 0 : index
    %c0_1 = arith.constant 0 : index
    %1 = vector.load %arg1[%c0_0, %c0_1] : memref<16x128xf32, #tpu.memory_space<vmem>>, vector<1x128xf32>
    %2 = arith.addf %0, %1 : vector<1x128xf32>
    %c0_2 = arith.constant 0 : index
    %c0_3 = arith.constant 0 : index
    %3 = vector.load %arg0[%c0_2, %c0_3] : memref<768x128xf32, #tpu.memory_space<vmem>>, vector<128x128xf32>
    %cst = arith.constant dense<0.000000e+00> : vector<1x128xf32>
    %4 = tpu.matmul %2, %3, %cst {dimension_numbers = #tpu.dot_dimension_numbers<[1], [0], [0], [1], [0, 0, 1, 1], [], []>} : vector<1x128xf32>, vector<128x128xf32>, vector<1x128xf32> -> vector<1x128xf32>
    %5 = vector.extract_strided_slice %4 {offsets = [0, 0], sizes = [1, 48], strides = [1, 1]} : vector<1x128xf32> to vector<1x48xf32>
    %6 = arith.negf %5 : vector<1x48xf32>
    %7 = math.exp %6 : vector<1x48xf32>
    %cst_4 = arith.constant 1.000000e+00 : f32
    %8 = vector.broadcast %cst_4 : f32 to vector<1x48xf32>
    %9 = arith.addf %8, %7 : vector<1x48xf32>
    %10 = arith.divf %8, %9 : vector<1x48xf32>
    %11 = vector.extract_strided_slice %4 {offsets = [0, 48], sizes = [1, 16], strides = [1, 1]} : vector<1x128xf32> to vector<1x16xf32>
    %12 = math.tanh %11 : vector<1x16xf32>
    %13 = vector.extract_strided_slice %10 {offsets = [0, 0], sizes = [1, 16], strides = [1, 1]} : vector<1x48xf32> to vector<1x16xf32>
    %14 = vector.extract_strided_slice %10 {offsets = [0, 16], sizes = [1, 16], strides = [1, 1]} : vector<1x48xf32> to vector<1x16xf32>
    %15 = vector.extract_strided_slice %10 {offsets = [0, 32], sizes = [1, 16], strides = [1, 1]} : vector<1x48xf32> to vector<1x16xf32>
    %c8 = arith.constant 8 : index
    %c0_5 = arith.constant 0 : index
    %16 = vector.load %arg1[%c8, %c0_5] : memref<16x128xf32, #tpu.memory_space<vmem>>, vector<1x128xf32>
    %17 = vector.extract_strided_slice %16 {offsets = [0, 0], sizes = [1, 16], strides = [1, 1]} : vector<1x128xf32> to vector<1x16xf32>
    %18 = arith.mulf %14, %17 : vector<1x16xf32>
    %19 = arith.mulf %13, %12 : vector<1x16xf32>
    %20 = arith.addf %18, %19 : vector<1x16xf32>
    %21 = math.tanh %20 : vector<1x16xf32>
    %22 = arith.mulf %15, %21 : vector<1x16xf32>
    %cst_6 = arith.constant 0.000000e+00 : f32
    %23 = vector.broadcast %cst_6 : f32 to vector<1x112xf32>
    %24 = tpu.concatenate %22, %23 in 1 : vector<1x16xf32>, vector<1x112xf32> -> vector<1x128xf32>
    %c1 = arith.constant 1 : index
    %c0_7 = arith.constant 0 : index
    %25 = vector.load %arg1[%c1, %c0_7] : memref<16x128xf32, #tpu.memory_space<vmem>>, vector<1x128xf32>
    %26 = arith.addf %24, %25 : vector<1x128xf32>
    %c128 = arith.constant 128 : index
    %c0_8 = arith.constant 0 : index
    %27 = vector.load %arg0[%c128, %c0_8] : memref<768x128xf32, #tpu.memory_space<vmem>>, vector<128x128xf32>
    %cst_9 = arith.constant dense<0.000000e+00> : vector<1x128xf32>
    %28 = tpu.matmul %26, %27, %cst_9 {dimension_numbers = #tpu.dot_dimension_numbers<[1], [0], [0], [1], [0, 0, 1, 1], [], []>} : vector<1x128xf32>, vector<128x128xf32>, vector<1x128xf32> -> vector<1x128xf32>
    %29 = vector.extract_strided_slice %28 {offsets = [0, 0], sizes = [1, 48], strides = [1, 1]} : vector<1x128xf32> to vector<1x48xf32>
    %30 = arith.negf %29 : vector<1x48xf32>
    %31 = math.exp %30 : vector<1x48xf32>
    %cst_10 = arith.constant 1.000000e+00 : f32
    %32 = vector.broadcast %cst_10 : f32 to vector<1x48xf32>
    %33 = arith.addf %32, %31 : vector<1x48xf32>
    %34 = arith.divf %32, %33 : vector<1x48xf32>
    %35 = vector.extract_strided_slice %28 {offsets = [0, 48], sizes = [1, 16], strides = [1, 1]} : vector<1x128xf32> to vector<1x16xf32>
    %36 = math.tanh %35 : vector<1x16xf32>
    %37 = vector.extract_strided_slice %34 {offsets = [0, 0], sizes = [1, 16], strides = [1, 1]} : vector<1x48xf32> to vector<1x16xf32>
    %38 = vector.extract_strided_slice %34 {offsets = [0, 16], sizes = [1, 16], strides = [1, 1]} : vector<1x48xf32> to vector<1x16xf32>
    %39 = vector.extract_strided_slice %34 {offsets = [0, 32], sizes = [1, 16], strides = [1, 1]} : vector<1x48xf32> to vector<1x16xf32>
    %c9 = arith.constant 9 : index
    %c0_11 = arith.constant 0 : index
    %40 = vector.load %arg1[%c9, %c0_11] : memref<16x128xf32, #tpu.memory_space<vmem>>, vector<1x128xf32>
    %41 = vector.extract_strided_slice %40 {offsets = [0, 0], sizes = [1, 16], strides = [1, 1]} : vector<1x128xf32> to vector<1x16xf32>
    %42 = arith.mulf %38, %41 : vector<1x16xf32>
    %43 = arith.mulf %37, %36 : vector<1x16xf32>
    %44 = arith.addf %42, %43 : vector<1x16xf32>
    %45 = math.tanh %44 : vector<1x16xf32>
    %46 = arith.mulf %39, %45 : vector<1x16xf32>
    %cst_12 = arith.constant 0.000000e+00 : f32
    %47 = vector.broadcast %cst_12 : f32 to vector<1x112xf32>
    %48 = tpu.concatenate %46, %47 in 1 : vector<1x16xf32>, vector<1x112xf32> -> vector<1x128xf32>
    %c2 = arith.constant 2 : index
    %c0_13 = arith.constant 0 : index
    %49 = vector.load %arg1[%c2, %c0_13] : memref<16x128xf32, #tpu.memory_space<vmem>>, vector<1x128xf32>
    %50 = arith.addf %48, %49 : vector<1x128xf32>
    %c256 = arith.constant 256 : index
    %c0_14 = arith.constant 0 : index
    %51 = vector.load %arg0[%c256, %c0_14] : memref<768x128xf32, #tpu.memory_space<vmem>>, vector<128x128xf32>
    %cst_15 = arith.constant dense<0.000000e+00> : vector<1x128xf32>
    %52 = tpu.matmul %50, %51, %cst_15 {dimension_numbers = #tpu.dot_dimension_numbers<[1], [0], [0], [1], [0, 0, 1, 1], [], []>} : vector<1x128xf32>, vector<128x128xf32>, vector<1x128xf32> -> vector<1x128xf32>
    %53 = vector.extract_strided_slice %52 {offsets = [0, 0], sizes = [1, 48], strides = [1, 1]} : vector<1x128xf32> to vector<1x48xf32>
    %54 = arith.negf %53 : vector<1x48xf32>
    %55 = math.exp %54 : vector<1x48xf32>
    %cst_16 = arith.constant 1.000000e+00 : f32
    %56 = vector.broadcast %cst_16 : f32 to vector<1x48xf32>
    %57 = arith.addf %56, %55 : vector<1x48xf32>
    %58 = arith.divf %56, %57 : vector<1x48xf32>
    %59 = vector.extract_strided_slice %52 {offsets = [0, 48], sizes = [1, 16], strides = [1, 1]} : vector<1x128xf32> to vector<1x16xf32>
    %60 = math.tanh %59 : vector<1x16xf32>
    %61 = vector.extract_strided_slice %58 {offsets = [0, 0], sizes = [1, 16], strides = [1, 1]} : vector<1x48xf32> to vector<1x16xf32>
    %62 = vector.extract_strided_slice %58 {offsets = [0, 16], sizes = [1, 16], strides = [1, 1]} : vector<1x48xf32> to vector<1x16xf32>
    %63 = vector.extract_strided_slice %58 {offsets = [0, 32], sizes = [1, 16], strides = [1, 1]} : vector<1x48xf32> to vector<1x16xf32>
    %c10 = arith.constant 10 : index
    %c0_17 = arith.constant 0 : index
    %64 = vector.load %arg1[%c10, %c0_17] : memref<16x128xf32, #tpu.memory_space<vmem>>, vector<1x128xf32>
    %65 = vector.extract_strided_slice %64 {offsets = [0, 0], sizes = [1, 16], strides = [1, 1]} : vector<1x128xf32> to vector<1x16xf32>
    %66 = arith.mulf %62, %65 : vector<1x16xf32>
    %67 = arith.mulf %61, %60 : vector<1x16xf32>
    %68 = arith.addf %66, %67 : vector<1x16xf32>
    %69 = math.tanh %68 : vector<1x16xf32>
    %70 = arith.mulf %63, %69 : vector<1x16xf32>
    %cst_18 = arith.constant 0.000000e+00 : f32
    %71 = vector.broadcast %cst_18 : f32 to vector<1x112xf32>
    %72 = tpu.concatenate %70, %71 in 1 : vector<1x16xf32>, vector<1x112xf32> -> vector<1x128xf32>
    %c3 = arith.constant 3 : index
    %c0_19 = arith.constant 0 : index
    %73 = vector.load %arg1[%c3, %c0_19] : memref<16x128xf32, #tpu.memory_space<vmem>>, vector<1x128xf32>
    %74 = arith.addf %72, %73 : vector<1x128xf32>
    %c384 = arith.constant 384 : index
    %c0_20 = arith.constant 0 : index
    %75 = vector.load %arg0[%c384, %c0_20] : memref<768x128xf32, #tpu.memory_space<vmem>>, vector<128x128xf32>
    %cst_21 = arith.constant dense<0.000000e+00> : vector<1x128xf32>
    %76 = tpu.matmul %74, %75, %cst_21 {dimension_numbers = #tpu.dot_dimension_numbers<[1], [0], [0], [1], [0, 0, 1, 1], [], []>} : vector<1x128xf32>, vector<128x128xf32>, vector<1x128xf32> -> vector<1x128xf32>
    %77 = vector.extract_strided_slice %76 {offsets = [0, 0], sizes = [1, 48], strides = [1, 1]} : vector<1x128xf32> to vector<1x48xf32>
    %78 = arith.negf %77 : vector<1x48xf32>
    %79 = math.exp %78 : vector<1x48xf32>
    %cst_22 = arith.constant 1.000000e+00 : f32
    %80 = vector.broadcast %cst_22 : f32 to vector<1x48xf32>
    %81 = arith.addf %80, %79 : vector<1x48xf32>
    %82 = arith.divf %80, %81 : vector<1x48xf32>
    %83 = vector.extract_strided_slice %76 {offsets = [0, 48], sizes = [1, 16], strides = [1, 1]} : vector<1x128xf32> to vector<1x16xf32>
    %84 = math.tanh %83 : vector<1x16xf32>
    %85 = vector.extract_strided_slice %82 {offsets = [0, 0], sizes = [1, 16], strides = [1, 1]} : vector<1x48xf32> to vector<1x16xf32>
    %86 = vector.extract_strided_slice %82 {offsets = [0, 16], sizes = [1, 16], strides = [1, 1]} : vector<1x48xf32> to vector<1x16xf32>
    %87 = vector.extract_strided_slice %82 {offsets = [0, 32], sizes = [1, 16], strides = [1, 1]} : vector<1x48xf32> to vector<1x16xf32>
    %c11 = arith.constant 11 : index
    %c0_23 = arith.constant 0 : index
    %88 = vector.load %arg1[%c11, %c0_23] : memref<16x128xf32, #tpu.memory_space<vmem>>, vector<1x128xf32>
    %89 = vector.extract_strided_slice %88 {offsets = [0, 0], sizes = [1, 16], strides = [1, 1]} : vector<1x128xf32> to vector<1x16xf32>
    %90 = arith.mulf %86, %89 : vector<1x16xf32>
    %91 = arith.mulf %85, %84 : vector<1x16xf32>
    %92 = arith.addf %90, %91 : vector<1x16xf32>
    %93 = math.tanh %92 : vector<1x16xf32>
    %94 = arith.mulf %87, %93 : vector<1x16xf32>
    %cst_24 = arith.constant 0.000000e+00 : f32
    %95 = vector.broadcast %cst_24 : f32 to vector<1x112xf32>
    %96 = tpu.concatenate %94, %95 in 1 : vector<1x16xf32>, vector<1x112xf32> -> vector<1x128xf32>
    %c4 = arith.constant 4 : index
    %c0_25 = arith.constant 0 : index
    %97 = vector.load %arg1[%c4, %c0_25] : memref<16x128xf32, #tpu.memory_space<vmem>>, vector<1x128xf32>
    %98 = arith.addf %96, %97 : vector<1x128xf32>
    %c512 = arith.constant 512 : index
    %c0_26 = arith.constant 0 : index
    %99 = vector.load %arg0[%c512, %c0_26] : memref<768x128xf32, #tpu.memory_space<vmem>>, vector<128x128xf32>
    %cst_27 = arith.constant dense<0.000000e+00> : vector<1x128xf32>
    %100 = tpu.matmul %98, %99, %cst_27 {dimension_numbers = #tpu.dot_dimension_numbers<[1], [0], [0], [1], [0, 0, 1, 1], [], []>} : vector<1x128xf32>, vector<128x128xf32>, vector<1x128xf32> -> vector<1x128xf32>
    %101 = vector.extract_strided_slice %100 {offsets = [0, 0], sizes = [1, 48], strides = [1, 1]} : vector<1x128xf32> to vector<1x48xf32>
    %102 = arith.negf %101 : vector<1x48xf32>
    %103 = math.exp %102 : vector<1x48xf32>
    %cst_28 = arith.constant 1.000000e+00 : f32
    %104 = vector.broadcast %cst_28 : f32 to vector<1x48xf32>
    %105 = arith.addf %104, %103 : vector<1x48xf32>
    %106 = arith.divf %104, %105 : vector<1x48xf32>
    %107 = vector.extract_strided_slice %100 {offsets = [0, 48], sizes = [1, 16], strides = [1, 1]} : vector<1x128xf32> to vector<1x16xf32>
    %108 = math.tanh %107 : vector<1x16xf32>
    %109 = vector.extract_strided_slice %106 {offsets = [0, 0], sizes = [1, 16], strides = [1, 1]} : vector<1x48xf32> to vector<1x16xf32>
    %110 = vector.extract_strided_slice %106 {offsets = [0, 16], sizes = [1, 16], strides = [1, 1]} : vector<1x48xf32> to vector<1x16xf32>
    %111 = vector.extract_strided_slice %106 {offsets = [0, 32], sizes = [1, 16], strides = [1, 1]} : vector<1x48xf32> to vector<1x16xf32>
    %c12 = arith.constant 12 : index
    %c0_29 = arith.constant 0 : index
    %112 = vector.load %arg1[%c12, %c0_29] : memref<16x128xf32, #tpu.memory_space<vmem>>, vector<1x128xf32>
    %113 = vector.extract_strided_slice %112 {offsets = [0, 0], sizes = [1, 16], strides = [1, 1]} : vector<1x128xf32> to vector<1x16xf32>
    %114 = arith.mulf %110, %113 : vector<1x16xf32>
    %115 = arith.mulf %109, %108 : vector<1x16xf32>
    %116 = arith.addf %114, %115 : vector<1x16xf32>
    %117 = math.tanh %116 : vector<1x16xf32>
    %118 = arith.mulf %111, %117 : vector<1x16xf32>
    %cst_30 = arith.constant 0.000000e+00 : f32
    %119 = vector.broadcast %cst_30 : f32 to vector<1x112xf32>
    %120 = tpu.concatenate %118, %119 in 1 : vector<1x16xf32>, vector<1x112xf32> -> vector<1x128xf32>
    %c5 = arith.constant 5 : index
    %c0_31 = arith.constant 0 : index
    %121 = vector.load %arg1[%c5, %c0_31] : memref<16x128xf32, #tpu.memory_space<vmem>>, vector<1x128xf32>
    %122 = arith.addf %120, %121 : vector<1x128xf32>
    %c640 = arith.constant 640 : index
    %c0_32 = arith.constant 0 : index
    %123 = vector.load %arg0[%c640, %c0_32] : memref<768x128xf32, #tpu.memory_space<vmem>>, vector<128x128xf32>
    %cst_33 = arith.constant dense<0.000000e+00> : vector<1x128xf32>
    %124 = tpu.matmul %122, %123, %cst_33 {dimension_numbers = #tpu.dot_dimension_numbers<[1], [0], [0], [1], [0, 0, 1, 1], [], []>} : vector<1x128xf32>, vector<128x128xf32>, vector<1x128xf32> -> vector<1x128xf32>
    %c0_34 = arith.constant 0 : index
    %c0_35 = arith.constant 0 : index
    %125 = vector.load %arg2[%c0_34, %c0_35] : memref<1x128xf32, #tpu.memory_space<vmem>>, vector<1x128xf32>
    tpu.vector_store %arg2[%c0_34, %c0_35], %124 {strides = array<i32>} : memref<1x128xf32, #tpu.memory_space<vmem>>, vector<1x128xf32>,
    %126 = tpu.concatenate %22, %46, %70, %94, %118, %20, %44, %68, %92, %116 in 0 : vector<1x16xf32>, vector<1x16xf32>, vector<1x16xf32>, vector<1x16xf32>, vector<1x16xf32>, vector<1x16xf32>, vector<1x16xf32>, vector<1x16xf32>, vector<1x16xf32>, vector<1x16xf32> -> vector<10x16xf32>
    %c0_36 = arith.constant 0 : index
    %c0_37 = arith.constant 0 : index
    %127 = vector.load %arg3[%c0_36, %c0_37] : memref<10x16xf32, #tpu.memory_space<vmem>>, vector<10x16xf32>
    tpu.vector_store %arg3[%c0_36, %c0_37], %126 {strides = array<i32>} : memref<10x16xf32, #tpu.memory_space<vmem>>, vector<10x16xf32>,
    return
  }
}

</mosaic_0001>

<llo_original>
// kernel: two_layer_net_forward.1
$region0: #{two_layer_net_forward.1}
  #allocation0 [shape = 'u32[]', space=smem, size = 0x4, offset = 0x4, fixed_abs, tag = 'smem constant byte address 0x4 - core index']
  #allocation1 [shape = 'u32[72,128]{1,0:T(1,128)}', space=vmem, size = 0x9000, scoped, tag = 'internal scratch']
  %s0 = inlined_call_operand.hbm [shape: f32[768,128], index: 0, kind: input, shape index: {}]
  %s1 = inlined_call_operand.vmem [shape: f32[16,128], index: 1, kind: input, shape index: {}]
  %s2 = inlined_call_operand.hbm [shape: f32[1,128], index: 2, kind: output, shape index: {0}]
  %s3 = inlined_call_operand.vmem [shape: f32[10,16], index: 3, kind: output, shape index: {1}]
  %4 = xla_tuple %s2, %s3
  %s5 = sld [smem:[#allocation0]]
  $region30: #{two_layer_net_forward.1} parent=0
    _
  %s7 = ssub.s32 1, %s5
  %s8 = scalar_select 0, %s7, %s5
  $region1: #{two_layer_net_forward.1} parent=0
    #allocation2 [shape = 'u8[393216]{0}', space=vmem, size = 0x60000, scoped, tag = 'input window, operand 0, single buffered']
    #allocation3 [shape = 's32[1]{0}', space=sflag, size = 0x4, scoped, tag = 'scoped memory for two_layer_net_forward.1']
    #allocation4 [shape = 's32[1]{0}', space=sflag, size = 0x4, scoped, tag = 'scoped memory for two_layer_net_forward.1']
    #allocation5 [shape = 'u8[512]{0}', space=vmem, size = 0x400, scoped, tag = 'output window, operand 0, single buffered']
    %9 = vsyncpa [#allocation3], 0
    %10 = vsyncpa [#allocation4], 0
    // Predicated region
    $region2: #{two_layer_net_forward.1} parent=1 // pred_check
      _
    $region3: #{two_layer_net_forward.1} parent=1 // pred_check_branch
      %12 = sbr.rel (0) target = $region5
    $region4: #{two_layer_net_forward.1} parent=1 // pred_region
      %14 = vsyncadd [#allocation3], 0
      %s15 = sshll.u32 %s0, 4
      %s16 = int_to_ptr.hbm [resolvable:$true] %s15
      %s17 = sshll.u32 [#allocation2], 4
      %s18 = int_to_ptr.vmem [resolvable:$true] %s17
      %23 = dma.hbm_to_vmem [thread:$0]  %s16, 12288, %s18, [#allocation3], 128, 128, 8
    $region5: #{two_layer_net_forward.1} parent=1 // pred_fallthru
      _
    // Predicated region
    $region6: #{two_layer_net_forward.1} parent=1 // pred_check
      _
    $region7: #{two_layer_net_forward.1} parent=1 // pred_check_branch
      %25 = sbr.rel (0) target = $region9
    $region8: #{two_layer_net_forward.1} parent=1 // pred_region
      _
    $region9: #{two_layer_net_forward.1} parent=1 // pred_fallthru
      _
    // Predicated region
    $region10: #{two_layer_net_forward.1} parent=1 // pred_check
      _
    $region11: #{two_layer_net_forward.1} parent=1 // pred_check_branch
      %27 = sbr.rel (0) target = $region13
    $region12: #{two_layer_net_forward.1} parent=1 // pred_region
      %29 = dma.done [#allocation3], 12288
    $region13: #{two_layer_net_forward.1} parent=1 // pred_fallthru
      _
    %v30 = vld [vmem:[%s1 + $0x6] sm:$0x1]
    %v31 = vld [vmem:[%s1] sm:$0x1]
    %v32 = vadd.f32 %v30, %v31
    %v33 = vld [vmem:[#allocation2] sm:$0xff]
    %v34 = vld [vmem:[#allocation2 + $0x8] sm:$0xff]
    %v35 = vld [vmem:[#allocation2 + $0x10] sm:$0xff]
    %v36 = vld [vmem:[#allocation2 + $0x18] sm:$0xff]
    %v37 = vld [vmem:[#allocation2 + $0x20] sm:$0xff]
    %v38 = vld [vmem:[#allocation2 + $0x28] sm:$0xff]
    %v39 = vld [vmem:[#allocation2 + $0x30] sm:$0xff]
    %v40 = vld [vmem:[#allocation2 + $0x38] sm:$0xff]
    %v41 = vld [vmem:[#allocation2 + $0x40] sm:$0xff]
    %v42 = vld [vmem:[#allocation2 + $0x48] sm:$0xff]
    %v43 = vld [vmem:[#allocation2 + $0x50] sm:$0xff]
    %v44 = vld [vmem:[#allocation2 + $0x58] sm:$0xff]
    %v45 = vld [vmem:[#allocation2 + $0x60] sm:$0xff]
    %v46 = vld [vmem:[#allocation2 + $0x68] sm:$0xff]
    %v47 = vld [vmem:[#allocation2 + $0x70] sm:$0xff]
    %v48 = vld [vmem:[#allocation2 + $0x78] sm:$0xff]
    %49 = vmatpush.msra.mxu0 %v48
    %50 = vmatpush.msra.mxu0 %v47
    %51 = vmatpush.msra.mxu0 %v46
    %52 = vmatpush.msra.mxu0 %v45
    %53 = vmatpush.msra.mxu0 %v44
    %54 = vmatpush.msra.mxu0 %v43
    %55 = vmatpush.msra.mxu0 %v42
    %56 = vmatpush.msra.mxu0 %v41
    %57 = vmatpush.msra.mxu0 %v40
    %58 = vmatpush.msra.mxu0 %v39
    %59 = vmatpush.msra.mxu0 %v38
    %60 = vmatpush.msra.mxu0 %v37
    %61 = vmatpush.msra.mxu0 %v36
    %62 = vmatpush.msra.mxu0 %v35
    %63 = vmatpush.msra.mxu0 %v34
    %64 = vmatpush.msra.mxu0 %v33
    %65 = vmatmul.f32.gmra.mxu0 %v32
    %v66 = vpop.f32.mrf.mxu0
    %v67 = vadd.f32 0.0, %v66
    %68 = vdwg.mxu0
    %v69 = vxor.u32 %v67, 2147483648
    %v70 = vmul.f32 %v69, 1.442695
    %v71 = vpow.pop %v70
    %v72 = vadd.f32 %v71, 1.0
    %v73 = vrcp.pop %v72
    %v74 = vmul.f32 %v72, %v73
    %v75 = vsub.f32 1.0, %v74
    %v76 = vmul.f32 %v73, %v75
    %v77 = vadd.f32 %v73, %v76
    %vm78 = vweird.f32 %v72
    %vm79 = vweird.f32 %v73
    %vm80 = vmor %vm78, %vm79
    %v81 = vsel %vm80, %v73, %v77
    %v82 = vand.u32 2147483647, %v72
    %vm83 = vcmp.eq.f32.partialorder %v82, 8.507059e+37
    %v84 = vand.u32 %v72, 2147483648
    %v85 = vor.u32 1.1754944e-38, %v84
    %v86 = vsel %vm83, %v85, %v81
    %v87 = vmul.f32 1.0, %v86
    %v88 = vtanh.pop %v67
    %v89 = vld [vmem:[%s1 + $0x8] sm:$0x1]
    %91 = vrot.lane.b32.xlu0 %v89, 16
    %v92 = vpop.permute.xlu0 %91
    %v94 = vmul.f32 %v87, %v92
    %96 = vrot.lane.b32.xlu0 %v88, 80
    %v97 = vpop.permute.xlu0 %96
    %v99 = vmul.f32 %v87, %v97
    %101 = vrot.lane.b32.xlu0 %v99, 16
    %v102 = vpop.permute.xlu0 %101
    %v104 = vadd.f32 %v94, %v102
    %v105 = vtanh.pop %v104
    %107 = vrot.lane.b32.xlu0 %v105, 16
    %v108 = vpop.permute.xlu0 %107
    %v110 = vmul.f32 %v87, %v108
    %112 = vrot.lane.b32.xlu0 %v110, 96
    %v113 = vpop.permute.xlu0 %112
    %vm115 = vcmask 130048
    %v116 = vsel %vm115, %v113, 0.0
    %v117 = vld [vmem:[%s1 + $0x1] sm:$0x1]
    %v118 = vadd.f32 %v116, %v117
    %v119 = vld [vmem:[#allocation2 + $0x80] sm:$0xff]
    %v120 = vld [vmem:[#allocation2 + $0x88] sm:$0xff]
    %v121 = vld [vmem:[#allocation2 + $0x90] sm:$0xff]
    %v122 = vld [vmem:[#allocation2 + $0x98] sm:$0xff]
    %v123 = vld [vmem:[#allocation2 + $0xa0] sm:$0xff]
    %v124 = vld [vmem:[#allocation2 + $0xa8] sm:$0xff]
    %v125 = vld [vmem:[#allocation2 + $0xb0] sm:$0xff]
    %v126 = vld [vmem:[#allocation2 + $0xb8] sm:$0xff]
    %v127 = vld [vmem:[#allocation2 + $0xc0] sm:$0xff]
    %v128 = vld [vmem:[#allocation2 + $0xc8] sm:$0xff]
    %v129 = vld [vmem:[#allocation2 + $0xd0] sm:$0xff]
    %v130 = vld [vmem:[#allocation2 + $0xd8] sm:$0xff]
    %v131 = vld [vmem:[#allocation2 + $0xe0] sm:$0xff]
    %v132 = vld [vmem:[#allocation2 + $0xe8] sm:$0xff]
    %v133 = vld [vmem:[#allocation2 + $0xf0] sm:$0xff]
    %v134 = vld [vmem:[#allocation2 + $0xf8] sm:$0xff]
    %135 = vmatpush.msra.mxu0 %v134
    %136 = vmatpush.msra.mxu0 %v133
    %137 = vmatpush.msra.mxu0 %v132
    %138 = vmatpush.msra.mxu0 %v131
    %139 = vmatpush.msra.mxu0 %v130
    %140 = vmatpush.msra.mxu0 %v129
    %141 = vmatpush.msra.mxu0 %v128
    %142 = vmatpush.msra.mxu0 %v127
    %143 = vmatpush.msra.mxu0 %v126
    %144 = vmatpush.msra.mxu0 %v125
    %145 = vmatpush.msra.mxu0 %v124
    %146 = vmatpush.msra.mxu0 %v123
    %147 = vmatpush.msra.mxu0 %v122
    %148 = vmatpush.msra.mxu0 %v121
    %149 = vmatpush.msra.mxu0 %v120
    %150 = vmatpush.msra.mxu0 %v119
    %151 = vmatmul.f32.gmra.mxu0 %v118
    %v152 = vpop.f32.mrf.mxu0
    %v153 = vadd.f32 0.0, %v152
    %154 = vdwg.mxu0
    %v155 = vxor.u32 %v153, 2147483648
    %v156 = vmul.f32 %v155, 1.442695
    %v157 = vpow.pop %v156
    %v158 = vadd.f32 %v157, 1.0
    %v159 = vrcp.pop %v158
    %v160 = vmul.f32 %v158, %v159
    %v161 = vsub.f32 1.0, %v160
    %v162 = vmul.f32 %v159, %v161
    %v163 = vadd.f32 %v159, %v162
    %vm164 = vweird.f32 %v158
    %vm165 = vweird.f32 %v159
    %vm166 = vmor %vm164, %vm165
    %v167 = vsel %vm166, %v159, %v163
    %v168 = vand.u32 2147483647, %v158
    %vm169 = vcmp.eq.f32.partialorder %v168, 8.507059e+37
    %v170 = vand.u32 %v158, 2147483648
    %v171 = vor.u32 1.1754944e-38, %v170
    %v172 = vsel %vm169, %v171, %v167
    %v173 = vmul.f32 1.0, %v172
    %v174 = vtanh.pop %v153
    %v175 = vld [vmem:[%s1 + $0x9] sm:$0x1]
    %177 = vrot.lane.b32.xlu0 %v175, 16
    %v178 = vpop.permute.xlu0 %177
    %v180 = vmul.f32 %v173, %v178
    %182 = vrot.lane.b32.xlu0 %v174, 80
    %v183 = vpop.permute.xlu0 %182
    %v185 = vmul.f32 %v173, %v183
    %187 = vrot.lane.b32.xlu0 %v185, 16
    %v188 = vpop.permute.xlu0 %187
    %v190 = vadd.f32 %v180, %v188
    %v191 = vtanh.pop %v190
    %193 = vrot.lane.b32.xlu0 %v191, 16
    %v194 = vpop.permute.xlu0 %193
    %v196 = vmul.f32 %v173, %v194
    %198 = vrot.lane.b32.xlu0 %v196, 96
    %v199 = vpop.permute.xlu0 %198
    %v201 = vsel %vm115, %v199, 0.0
    %v202 = vld [vmem:[%s1 + $0x2] sm:$0x1]
    %v203 = vadd.f32 %v201, %v202
    %v204 = vld [vmem:[#allocation2 + $0x100] sm:$0xff]
    %v205 = vld [vmem:[#allocation2 + $0x108] sm:$0xff]
    %v206 = vld [vmem:[#allocation2 + $0x110] sm:$0xff]
    %v207 = vld [vmem:[#allocation2 + $0x118] sm:$0xff]
    %v208 = vld [vmem:[#allocation2 + $0x120] sm:$0xff]
    %v209 = vld [vmem:[#allocation2 + $0x128] sm:$0xff]
    %v210 = vld [vmem:[#allocation2 + $0x130] sm:$0xff]
    %v211 = vld [vmem:[#allocation2 + $0x138] sm:$0xff]
    %v212 = vld [vmem:[#allocation2 + $0x140] sm:$0xff]
    %v213 = vld [vmem:[#allocation2 + $0x148] sm:$0xff]
    %v214 = vld [vmem:[#allocation2 + $0x150] sm:$0xff]
    %v215 = vld [vmem:[#allocation2 + $0x158] sm:$0xff]
    %v216 = vld [vmem:[#allocation2 + $0x160] sm:$0xff]
    %v217 = vld [vmem:[#allocation2 + $0x168] sm:$0xff]
    %v218 = vld [vmem:[#allocation2 + $0x170] sm:$0xff]
    %v219 = vld [vmem:[#allocation2 + $0x178] sm:$0xff]
    %220 = vmatpush.msra.mxu0 %v219
    %221 = vmatpush.msra.mxu0 %v218
    %222 = vmatpush.msra.mxu0 %v217
    %223 = vmatpush.msra.mxu0 %v216
    %224 = vmatpush.msra.mxu0 %v215
    %225 = vmatpush.msra.mxu0 %v214
    %226 = vmatpush.msra.mxu0 %v213
    %227 = vmatpush.msra.mxu0 %v212
    %228 = vmatpush.msra.mxu0 %v211
    %229 = vmatpush.msra.mxu0 %v210
    %230 = vmatpush.msra.mxu0 %v209
    %231 = vmatpush.msra.mxu0 %v208
    %232 = vmatpush.msra.mxu0 %v207
    %233 = vmatpush.msra.mxu0 %v206
    %234 = vmatpush.msra.mxu0 %v205
    %235 = vmatpush.msra.mxu0 %v204
    %236 = vmatmul.f32.gmra.mxu0 %v203
    %v237 = vpop.f32.mrf.mxu0
    %v238 = vadd.f32 0.0, %v237
    %239 = vdwg.mxu0
    %v240 = vxor.u32 %v238, 2147483648
    %v241 = vmul.f32 %v240, 1.442695
    %v242 = vpow.pop %v241
    %v243 = vadd.f32 %v242, 1.0
    %v244 = vrcp.pop %v243
    %v245 = vmul.f32 %v243, %v244
    %v246 = vsub.f32 1.0, %v245
    %v247 = vmul.f32 %v244, %v246
    %v248 = vadd.f32 %v244, %v247
    %vm249 = vweird.f32 %v243
    %vm250 = vweird.f32 %v244
    %vm251 = vmor %vm249, %vm250
    %v252 = vsel %vm251, %v244, %v248
    %v253 = vand.u32 2147483647, %v243
    %vm254 = vcmp.eq.f32.partialorder %v253, 8.507059e+37
    %v255 = vand.u32 %v243, 2147483648
    %v256 = vor.u32 1.1754944e-38, %v255
    %v257 = vsel %vm254, %v256, %v252
    %v258 = vmul.f32 1.0, %v257
    %v259 = vtanh.pop %v238
    %v260 = vld [vmem:[%s1 + $0xa] sm:$0x1]
    %262 = vrot.lane.b32.xlu0 %v260, 16
    %v263 = vpop.permute.xlu0 %262
    %v265 = vmul.f32 %v258, %v263
    %267 = vrot.lane.b32.xlu0 %v259, 80
    %v268 = vpop.permute.xlu0 %267
    %v270 = vmul.f32 %v258, %v268
    %272 = vrot.lane.b32.xlu0 %v270, 16
    %v273 = vpop.permute.xlu0 %272
    %v275 = vadd.f32 %v265, %v273
    %v276 = vtanh.pop %v275
    %278 = vrot.lane.b32.xlu0 %v276, 16
    %v279 = vpop.permute.xlu0 %278
    %v281 = vmul.f32 %v258, %v279
    %283 = vrot.lane.b32.xlu0 %v281, 96
    %v284 = vpop.permute.xlu0 %283
    %v286 = vsel %vm115, %v284, 0.0
    %v287 = vld [vmem:[%s1 + $0x3] sm:$0x1]
    %v288 = vadd.f32 %v286, %v287
    %v289 = vld [vmem:[#allocation2 + $0x180] sm:$0xff]
    %v290 = vld [vmem:[#allocation2 + $0x188] sm:$0xff]
    %v291 = vld [vmem:[#allocation2 + $0x190] sm:$0xff]
    %v292 = vld [vmem:[#allocation2 + $0x198] sm:$0xff]
    %v293 = vld [vmem:[#allocation2 + $0x1a0] sm:$0xff]
    %v294 = vld [vmem:[#allocation2 + $0x1a8] sm:$0xff]
    %v295 = vld [vmem:[#allocation2 + $0x1b0] sm:$0xff]
    %v296 = vld [vmem:[#allocation2 + $0x1b8] sm:$0xff]
    %v297 = vld [vmem:[#allocation2 + $0x1c0] sm:$0xff]
    %v298 = vld [vmem:[#allocation2 + $0x1c8] sm:$0xff]
    %v299 = vld [vmem:[#allocation2 + $0x1d0] sm:$0xff]
    %v300 = vld [vmem:[#allocation2 + $0x1d8] sm:$0xff]
    %v301 = vld [vmem:[#allocation2 + $0x1e0] sm:$0xff]
    %v302 = vld [vmem:[#allocation2 + $0x1e8] sm:$0xff]
    %v303 = vld [vmem:[#allocation2 + $0x1f0] sm:$0xff]
    %v304 = vld [vmem:[#allocation2 + $0x1f8] sm:$0xff]
    %305 = vmatpush.msra.mxu0 %v304
    %306 = vmatpush.msra.mxu0 %v303
    %307 = vmatpush.msra.mxu0 %v302
    %308 = vmatpush.msra.mxu0 %v301
    %309 = vmatpush.msra.mxu0 %v300
    %310 = vmatpush.msra.mxu0 %v299
    %311 = vmatpush.msra.mxu0 %v298
    %312 = vmatpush.msra.mxu0 %v297
    %313 = vmatpush.msra.mxu0 %v296
    %314 = vmatpush.msra.mxu0 %v295
    %315 = vmatpush.msra.mxu0 %v294
    %316 = vmatpush.msra.mxu0 %v293
    %317 = vmatpush.msra.mxu0 %v292
    %318 = vmatpush.msra.mxu0 %v291
    %319 = vmatpush.msra.mxu0 %v290
    %320 = vmatpush.msra.mxu0 %v289
    %321 = vmatmul.f32.gmra.mxu0 %v288
    %v322 = vpop.f32.mrf.mxu0
    %v323 = vadd.f32 0.0, %v322
    %324 = vdwg.mxu0
    %v325 = vxor.u32 %v323, 2147483648
    %v326 = vmul.f32 %v325, 1.442695
    %v327 = vpow.pop %v326
    %v328 = vadd.f32 %v327, 1.0
    %v329 = vrcp.pop %v328
    %v330 = vmul.f32 %v328, %v329
    %v331 = vsub.f32 1.0, %v330
    %v332 = vmul.f32 %v329, %v331
    %v333 = vadd.f32 %v329, %v332
    %vm334 = vweird.f32 %v328
    %vm335 = vweird.f32 %v329
    %vm336 = vmor %vm334, %vm335
    %v337 = vsel %vm336, %v329, %v333
    %v338 = vand.u32 2147483647, %v328
    %vm339 = vcmp.eq.f32.partialorder %v338, 8.507059e+37
    %v340 = vand.u32 %v328, 2147483648
    %v341 = vor.u32 1.1754944e-38, %v340
    %v342 = vsel %vm339, %v341, %v337
    %v343 = vmul.f32 1.0, %v342
    %v344 = vtanh.pop %v323
    %v345 = vld [vmem:[%s1 + $0xb] sm:$0x1]
    %347 = vrot.lane.b32.xlu0 %v345, 16
    %v348 = vpop.permute.xlu0 %347
    %v350 = vmul.f32 %v343, %v348
    %352 = vrot.lane.b32.xlu0 %v344, 80
    %v353 = vpop.permute.xlu0 %352
    %v355 = vmul.f32 %v343, %v353
    %357 = vrot.lane.b32.xlu0 %v355, 16
    %v358 = vpop.permute.xlu0 %357
    %v360 = vadd.f32 %v350, %v358
    %v361 = vtanh.pop %v360
    %363 = vrot.lane.b32.xlu0 %v361, 16
    %v364 = vpop.permute.xlu0 %363
    %v366 = vmul.f32 %v343, %v364
    %368 = vrot.lane.b32.xlu0 %v366, 96
    %v369 = vpop.permute.xlu0 %368
    %v371 = vsel %vm115, %v369, 0.0
    %v372 = vld [vmem:[%s1 + $0x4] sm:$0x1]
    %v373 = vadd.f32 %v371, %v372
    %v374 = vld [vmem:[#allocation2 + $0x200] sm:$0xff]
    %v375 = vld [vmem:[#allocation2 + $0x208] sm:$0xff]
    %v376 = vld [vmem:[#allocation2 + $0x210] sm:$0xff]
    %v377 = vld [vmem:[#allocation2 + $0x218] sm:$0xff]
    %v378 = vld [vmem:[#allocation2 + $0x220] sm:$0xff]
    %v379 = vld [vmem:[#allocation2 + $0x228] sm:$0xff]
    %v380 = vld [vmem:[#allocation2 + $0x230] sm:$0xff]
    %v381 = vld [vmem:[#allocation2 + $0x238] sm:$0xff]
    %v382 = vld [vmem:[#allocation2 + $0x240] sm:$0xff]
    %v383 = vld [vmem:[#allocation2 + $0x248] sm:$0xff]
    %v384 = vld [vmem:[#allocation2 + $0x250] sm:$0xff]
    %v385 = vld [vmem:[#allocation2 + $0x258] sm:$0xff]
    %v386 = vld [vmem:[#allocation2 + $0x260] sm:$0xff]
    %v387 = vld [vmem:[#allocation2 + $0x268] sm:$0xff]
    %v388 = vld [vmem:[#allocation2 + $0x270] sm:$0xff]
    %v389 = vld [vmem:[#allocation2 + $0x278] sm:$0xff]
    %390 = vmatpush.msra.mxu0 %v389
    %391 = vmatpush.msra.mxu0 %v388
    %392 = vmatpush.msra.mxu0 %v387
    %393 = vmatpush.msra.mxu0 %v386
    %394 = vmatpush.msra.mxu0 %v385
    %395 = vmatpush.msra.mxu0 %v384
    %396 = vmatpush.msra.mxu0 %v383
    %397 = vmatpush.msra.mxu0 %v382
    %398 = vmatpush.msra.mxu0 %v381
    %399 = vmatpush.msra.mxu0 %v380
    %400 = vmatpush.msra.mxu0 %v379
    %401 = vmatpush.msra.mxu0 %v378
    %402 = vmatpush.msra.mxu0 %v377
    %403 = vmatpush.msra.mxu0 %v376
    %404 = vmatpush.msra.mxu0 %v375
    %405 = vmatpush.msra.mxu0 %v374
    %406 = vmatmul.f32.gmra.mxu0 %v373
    %v407 = vpop.f32.mrf.mxu0
    %v408 = vadd.f32 0.0, %v407
    %409 = vdwg.mxu0
    %v410 = vxor.u32 %v408, 2147483648
    %v411 = vmul.f32 %v410, 1.442695
    %v412 = vpow.pop %v411
    %v413 = vadd.f32 %v412, 1.0
    %v414 = vrcp.pop %v413
    %v415 = vmul.f32 %v413, %v414
    %v416 = vsub.f32 1.0, %v415
    %v417 = vmul.f32 %v414, %v416
    %v418 = vadd.f32 %v414, %v417
    %vm419 = vweird.f32 %v413
    %vm420 = vweird.f32 %v414
    %vm421 = vmor %vm419, %vm420
    %v422 = vsel %vm421, %v414, %v418
    %v423 = vand.u32 2147483647, %v413
    %vm424 = vcmp.eq.f32.partialorder %v423, 8.507059e+37
    %v425 = vand.u32 %v413, 2147483648
    %v426 = vor.u32 1.1754944e-38, %v425
    %v427 = vsel %vm424, %v426, %v422
    %v428 = vmul.f32 1.0, %v427
    %v429 = vtanh.pop %v408
    %v430 = vld [vmem:[%s1 + $0xc] sm:$0x1]
    %432 = vrot.lane.b32.xlu0 %v430, 16
    %v433 = vpop.permute.xlu0 %432
    %v435 = vmul.f32 %v428, %v433
    %437 = vrot.lane.b32.xlu0 %v429, 80
    %v438 = vpop.permute.xlu0 %437
    %v440 = vmul.f32 %v428, %v438
    %442 = vrot.lane.b32.xlu0 %v440, 16
    %v443 = vpop.permute.xlu0 %442
    %v445 = vadd.f32 %v435, %v443
    %v446 = vtanh.pop %v445
    %448 = vrot.lane.b32.xlu0 %v446, 16
    %v449 = vpop.permute.xlu0 %448
    %v451 = vmul.f32 %v428, %v449
    %453 = vrot.lane.b32.xlu0 %v451, 96
    %v454 = vpop.permute.xlu0 %453
    %v456 = vsel %vm115, %v454, 0.0
    %v457 = vld [vmem:[%s1 + $0x5] sm:$0x1]
    %v458 = vadd.f32 %v456, %v457
    %v459 = vld [vmem:[#allocation2 + $0x280] sm:$0xff]
    %v460 = vld [vmem:[#allocation2 + $0x288] sm:$0xff]
    %v461 = vld [vmem:[#allocation2 + $0x290] sm:$0xff]
    %v462 = vld [vmem:[#allocation2 + $0x298] sm:$0xff]
    %v463 = vld [vmem:[#allocation2 + $0x2a0] sm:$0xff]
    %v464 = vld [vmem:[#allocation2 + $0x2a8] sm:$0xff]
    %v465 = vld [vmem:[#allocation2 + $0x2b0] sm:$0xff]
    %v466 = vld [vmem:[#allocation2 + $0x2b8] sm:$0xff]
    %v467 = vld [vmem:[#allocation2 + $0x2c0] sm:$0xff]
    %v468 = vld [vmem:[#allocation2 + $0x2c8] sm:$0xff]
    %v469 = vld [vmem:[#allocation2 + $0x2d0] sm:$0xff]
    %v470 = vld [vmem:[#allocation2 + $0x2d8] sm:$0xff]
    %v471 = vld [vmem:[#allocation2 + $0x2e0] sm:$0xff]
    %v472 = vld [vmem:[#allocation2 + $0x2e8] sm:$0xff]
    %v473 = vld [vmem:[#allocation2 + $0x2f0] sm:$0xff]
    %v474 = vld [vmem:[#allocation2 + $0x2f8] sm:$0xff]
    %475 = vmatpush.msra.mxu0 %v474
    %476 = vmatpush.msra.mxu0 %v473
    %477 = vmatpush.msra.mxu0 %v472
    %478 = vmatpush.msra.mxu0 %v471
    %479 = vmatpush.msra.mxu0 %v470
    %480 = vmatpush.msra.mxu0 %v469
    %481 = vmatpush.msra.mxu0 %v468
    %482 = vmatpush.msra.mxu0 %v467
    %483 = vmatpush.msra.mxu0 %v466
    %484 = vmatpush.msra.mxu0 %v465
    %485 = vmatpush.msra.mxu0 %v464
    %486 = vmatpush.msra.mxu0 %v463
    %487 = vmatpush.msra.mxu0 %v462
    %488 = vmatpush.msra.mxu0 %v461
    %489 = vmatpush.msra.mxu0 %v460
    %490 = vmatpush.msra.mxu0 %v459
    %491 = vmatmul.f32.gmra.mxu0 %v458
    %v492 = vpop.f32.mrf.mxu0
    %v493 = vadd.f32 0.0, %v492
    %494 = vdwg.mxu0
    %495 = vst [vmem:[#allocation5] sm:$0x1] %v493
    %v496 = vrot.slane %v196, 7
    %v498 = vrot.slane %v281, 6
    %v500 = vrot.slane %v366, 5
    %v502 = vrot.slane %v451, 4
    %v505 = vrot.slane %v104, 3
    %506 = vrot.lane.b32.xlu0 %v505, 16
    %v507 = vpop.permute.xlu0 %506
    %v510 = vrot.slane %v190, 2
    %511 = vrot.lane.b32.xlu0 %v510, 16
    %v512 = vpop.permute.xlu0 %511
    %v515 = vrot.slane %v275, 1
    %516 = vrot.lane.b32.xlu0 %v515, 16
    %v517 = vpop.permute.xlu0 %516
    %520 = vrot.lane.b32.xlu0 %v360, 16
    %v521 = vpop.permute.xlu0 %520
    %v524 = vrot.slane %v445, 7
    %525 = vrot.lane.b32.xlu0 %v524, 16
    %v526 = vpop.permute.xlu0 %525
    %vm528 = vcmask 1040384
    %v529 = vsel %vm528, %v110, %v496
    %vm530 = vcmask 1041408
    %v531 = vsel %vm530, %v529, %v498
    %vm532 = vcmask 1042432
    %v533 = vsel %vm532, %v531, %v500
    %vm534 = vcmask 1043456
    %v535 = vsel %vm534, %v533, %v502
    %vm536 = vcmask 1044480
    %v537 = vsel %vm536, %v535, %v507
    %vm538 = vcmask 1045504
    %v539 = vsel %vm538, %v537, %v512
    %vm540 = vcmask 1046528
    %v541 = vsel %vm540, %v539, %v517
    %v542 = vsel %vm528, %v521, %v526
    %545 = vrot.lane.b32.xlu0 %v541, 96
    %v546 = vpop.permute.xlu0 %545
    %547 = vrot.lane.b32.xlu0 %v542, 96
    %v548 = vpop.permute.xlu0 %547
    %551 = vst.msk [vmem:[%s3] sm:$0xff] %vm115, %v546
    %vm552 = vcmask 123904
    %553 = vst.msk [vmem:[%s3 + $0x8] sm:$0x3] %vm552, %v548
    // Predicated region
    $region14: #{two_layer_net_forward.1} parent=1 // pred_check
      _
    $region15: #{two_layer_net_forward.1} parent=1 // pred_check_branch
      %555 = sbr.rel (0) target = $region17
    $region16: #{two_layer_net_forward.1} parent=1 // pred_region
      %557 = vsyncadd [#allocation4], 0
      %s559 = sshll.u32 [#allocation5], 4
      %s560 = int_to_ptr.vmem [resolvable:$true] %s559
      %s561 = sshll.u32 %s2, 4
      %s562 = int_to_ptr.hbm [resolvable:$true] %s561
      %564 = dma.vmem_to_hbm [thread:$0]  %s560, 16, %s562, [#allocation4]
    $region17: #{two_layer_net_forward.1} parent=1 // pred_fallthru
      _
    // Predicated region
    $region18: #{two_layer_net_forward.1} parent=1 // pred_check
      _
    $region19: #{two_layer_net_forward.1} parent=1 // pred_check_branch
      %566 = sbr.rel (0) target = $region21
    $region20: #{two_layer_net_forward.1} parent=1 // pred_region
      _
    $region21: #{two_layer_net_forward.1} parent=1 // pred_fallthru
      _
    // Predicated region
    $region22: #{two_layer_net_forward.1} parent=1 // pred_check
      _
    $region23: #{two_layer_net_forward.1} parent=1 // pred_check_branch
      %568 = sbr.rel (0) target = $region25
    $region24: #{two_layer_net_forward.1} parent=1 // pred_region
      %570 = dma.done [#allocation4], 16
    $region25: #{two_layer_net_forward.1} parent=1 // pred_fallthru
      _
    // Predicated region
    $region26: #{two_layer_net_forward.1} parent=1 // pred_check
      _
    $region27: #{two_layer_net_forward.1} parent=1 // pred_check_branch
      %572 = sbr.rel (0) target = $region29
    $region28: #{two_layer_net_forward.1} parent=1 // pred_region
      _
    $region29: #{two_layer_net_forward.1} parent=1 // pred_fallthru
      _
    %573 = vsyncpa [#allocation3], 1
    %574 = vsyncpa [#allocation4], 1

</llo_original>
